<compile_context>
chip_gen: v7x
topology: tpu7x:2x2x1
jax: 0.10.0
libtpu: 0.0.40
codegen_flags: <defaults>
</compile_context>

<pallas_src>
import jax
import jax.numpy as jnp
from jax.experimental import pallas as pl
from jax.experimental.pallas import tpu as pltpu


def _round_up(a, b):
    return (a + b - 1) // b * b


# ---------------------------------------------------------------------------
# Pallas kernels: fused base-linear + LoRA-B branch, K-tiled.
# ---------------------------------------------------------------------------
def _lora_kernel_f32(x_ref, w_ref, b_ref, ax_ref, bb_ref, out_ref):
    """f32 output: accumulate directly into the resident output tile."""
    @pl.when(pl.program_id(2) == 0)
    def _():
        # bias + LoRA branch seed the accumulator (epilogue-free).
        out_ref[...] = b_ref[...] + jnp.dot(
            ax_ref[...], bb_ref[...], preferred_element_type=jnp.float32)

    out_ref[...] += jnp.dot(x_ref[...], w_ref[...],
                            preferred_element_type=jnp.float32)


def _lora_kernel_acc(x_ref, w_ref, b_ref, ax_ref, bb_ref, out_ref, acc_ref):
    """Non-f32 output: f32 VMEM accumulator + cast in the epilogue."""
    k = pl.program_id(2)

    @pl.when(k == 0)
    def _():
        acc_ref[...] = b_ref[...] + jnp.dot(
            ax_ref[...], bb_ref[...], preferred_element_type=jnp.float32)

    acc_ref[...] += jnp.dot(x_ref[...], w_ref[...],
                            preferred_element_type=jnp.float32)

    @pl.when(k == pl.num_programs(2) - 1)
    def _():
        out_ref[...] = acc_ref[...].astype(out_ref.dtype)


def _vmem_limit_bytes(need):
    """Tie the scoped VMEM limit to actual need, clamped to 75% of physical
    VMEM (v7x has only 64 MiB per TensorCore)."""
    try:
        cap = pltpu.get_tpu_info().vmem_capacity_bytes
    except Exception:  # pragma: no cover - conservative fallback
        cap = 64 << 20
    return int(min(max(need * 3 // 2 + (1 << 20), 16 << 20), (cap * 3) // 4))


def lora_linear(x, ax, w_base_p, bias_p, lora_b_eff_p, *, tm, tn, tk,
                out_dtype):
    """Fused base-linear + LoRA forward on pre-padded operands.

    x:            (Mp, Kp)  activation, tile-padded, compute dtype
    ax:           (Mp, r)   precomputed x @ lora_A, M-padded, compute dtype
    w_base_p:     (Kp, Np)  frozen base weight (pre-padded at init)
    bias_p:       (1, Np)   f32 bias (pre-padded at init)
    lora_b_eff_p: (r, Np)   lora_B * scaling [* magnitude] (pre-padded)
    Returns (Mp, Np) in out_dtype; caller slices back to the logical shape.
    """
    Mp, Kp = x.shape
    Np = w_base_p.shape[1]
    r = ax.shape[1]
    grid = (Mp // tm, Np // tn, Kp // tk)

    use_acc = jnp.dtype(out_dtype) != jnp.dtype(jnp.float32)
    kernel = _lora_kernel_acc if use_acc else _lora_kernel_f32
    scratch = [pltpu.VMEM((tm, tn), jnp.float32)] if use_acc else []

    in_bytes = jnp.dtype(x.dtype).itemsize
    out_bytes = jnp.dtype(out_dtype).itemsize
    need = (2 * (tm * tk + tk * tn + tm * r + r * tn) * in_bytes
            + 2 * tn * 4                                  # bias (f32)
            + 2 * tm * tn * out_bytes                     # output tile
            + (tm * tn * 4 if use_acc else 0))            # accumulator

    n_i, n_j = grid[0], grid[1]
    cost = pl.CostEstimate(
        flops=2 * Mp * Kp * Np + 2 * Mp * r * Np,
        transcendentals=0,
        # account for re-streaming of x across j tiles and w_base across i
        bytes_accessed=int((n_j * Mp * Kp + n_i * Kp * Np
                            + Mp * r + n_i * r * Np) * in_bytes
                           + n_i * Np * 4 + Mp * Np * out_bytes),
    )

    return pl.pallas_call(
        kernel,
        out_shape=jax.ShapeDtypeStruct((Mp, Np), out_dtype),
        grid_spec=pltpu.PrefetchScalarGridSpec(
            num_scalar_prefetch=0,
            grid=grid,
            in_specs=[
                pl.BlockSpec((tm, tk), lambda i, j, k: (i, k)),   # x tile
                # On v5e, if profiling shows exposed weight DMA, add
                # pipeline_mode=pl.Buffered(3) to this spec.
                pl.BlockSpec((tk, tn), lambda i, j, k: (k, j)),   # base weight
                pl.BlockSpec((1, tn), lambda i, j, k: (0, j)),    # bias
                pl.BlockSpec((tm, r), lambda i, j, k: (i, 0)),    # ax = x @ A
                pl.BlockSpec((r, tn), lambda i, j, k: (0, j)),    # lora_B_eff
            ],
            out_specs=pl.BlockSpec((tm, tn), lambda i, j, k: (i, j)),
            scratch_shapes=scratch,
        ),
        compiler_params=pltpu.CompilerParams(
            dimension_semantics=("parallel", "parallel", "arbitrary"),
            vmem_limit_bytes=_vmem_limit_bytes(need),
        ),
        cost_estimate=cost,
    )(x, w_base_p, bias_p, ax, lora_b_eff_p)


# ---------------------------------------------------------------------------
# JAX-side "LoraModel": a base model with one target Linear replaced by a
# LoraLayer whose forward is the fused Pallas kernel above.
# ---------------------------------------------------------------------------
class LoraConfig:
    def __init__(self, lora_r_=8, lora_alpha_=16, lora_dropout_=0.0,
                 use_dora_=True, target_modules_=("fc",)):
        self.lora_r_ = lora_r_
        self.lora_alpha_ = lora_alpha_
        self.lora_dropout_ = lora_dropout_
        self.use_dora_ = use_dora_
        self.target_modules_ = target_modules_


class LoraModelJax:
    """Base model = single nn.Linear('fc') matching target_modules, so its
    forward is exactly one LoraLayer forward (the fused kernel)."""

    def __init__(self, key, in_features, out_features, config: LoraConfig,
                 compute_dtype=None, tm=256, tn=256, tk=1024):
        self.config = config
        self.in_features = in_features
        self.out_features = out_features
        self.mm_dtype = compute_dtype or jnp.float32

        k_w, k_b, k_a, k_bb = jax.random.split(key, 4)
        # base layer params (frozen) — PyTorch nn.Linear default-ish init
        bound = 1.0 / jnp.sqrt(in_features)
        self.w_base = jax.random.uniform(
            k_w, (in_features, out_features), jnp.float32, -bound, bound)
        self.bias = jax.random.uniform(
            k_b, (1, out_features), jnp.float32, -bound, bound)
        # LoRA params: normal(std=0.02), matching nn.init.normal_
        self.lora_a = 0.02 * jax.random.normal(
            k_a, (in_features, config.lora_r_), jnp.float32)
        self.lora_b = 0.02 * jax.random.normal(
            k_bb, (config.lora_r_, out_features), jnp.float32)
        self.scaling = config.lora_alpha_ / config.lora_r_
        self.use_dora = config.use_dora_
        # DoRA magnitude vector initialized to ones (matches the module; NOTE:
        # this mirrors the given PyTorch code, not peft's normalized DoRA).
        self.magnitude = jnp.ones((1, out_features), jnp.float32)

        # --- tile selection (fixed at init; only tm is re-clamped per call) ---
        n128 = _round_up(out_features, 128)
        k128 = _round_up(in_features, 128)
        self.tn = min(tn, n128)
        # v7x has 2 TensorCores: prefer >= 2 lane-dense N tiles so small-M
        # (decode) calls still give both cores work on the "parallel" j axis.
        n_lanes = n128 // 128
        if n_lanes >= 2 and n128 // self.tn < 2:
            self.tn = 128 * (n_lanes // 2)
        self.tk = min(tk, k128)
        self.tm = tm
        self.Np = _round_up(out_features, self.tn)
        self.Kp = _round_up(in_features, self.tk)

        # --- one-time fold + pad + cast of the frozen parameter stream ---
        lora_b_eff = self.lora_b * self.scaling
        if self.use_dora:
            lora_b_eff = lora_b_eff * self.magnitude
        pad_k = self.Kp - in_features
        pad_n = self.Np - out_features
        self.w_base_p = jnp.pad(
            self.w_base, ((0, pad_k), (0, pad_n))).astype(self.mm_dtype)
        self.bias_p = jnp.pad(
            self.bias, ((0, 0), (0, pad_n))).astype(jnp.float32)
        self.lora_b_eff_p = jnp.pad(
            lora_b_eff, ((0, 0), (0, pad_n))).astype(self.mm_dtype)
        self.lora_a_c = self.lora_a.astype(self.mm_dtype)

    def __call__(self, x):
        # x: (batch, seq, in_features) -> flatten leading dims for the kernel
        batch, seq, k = x.shape
        assert k == self.in_features
        out_dtype = x.dtype
        M = batch * seq
        x2d = x.reshape(M, k).astype(self.mm_dtype)

        # LoRA bottleneck (x @ A) hoisted out of the fused kernel's (j, k)
        # loops: it is ~r/N of the total FLOPs, and inside the kernel it would
        # be re-done per N tile and padded to a full 128-lane MXU tile.
        ax = jnp.dot(x2d, self.lora_a_c,
                     preferred_element_type=jnp.float32).astype(self.mm_dtype)

        tm = min(self.tm, _round_up(M, 8))
        Mp = _round_up(M, tm)
        pad_m = Mp - M
        pad_k = self.Kp - k
        if pad_m or pad_k:
            x2d = jnp.pad(x2d, ((0, pad_m), (0, pad_k)))
        if pad_m:
            ax = jnp.pad(ax, ((0, pad_m), (0, 0)))

        out = lora_linear(x2d, ax, self.w_base_p, self.bias_p,
                          self.lora_b_eff_p, tm=tm, tn=self.tn, tk=self.tk,
                          out_dtype=out_dtype)
        return out[:M, :self.out_features].reshape(batch, seq,
                                                   self.out_features)

    def reference(self, x):
        """Pure-JAX reference for correctness checking."""
        base = jnp.einsum("bsk,kn->bsn", x, self.w_base) + self.bias[0]
        lora = jnp.einsum("bsr,rn->bsn",
                          jnp.einsum("bsk,kr->bsr", x, self.lora_a),
                          self.lora_b) * self.scaling
        if self.use_dora:
            lora = lora * self.magnitude[0]
        return base + lora


if __name__ == "__main__":
    key = jax.random.PRNGKey(0)
    k_model, k_x = jax.random.split(key)

    batch, seq = 2, 8
    in_features, out_features = 128, 128
    config = LoraConfig(lora_r_=8, lora_alpha_=16, lora_dropout_=0.0,
                        use_dora_=True, target_modules_=("fc",))

    # compute_dtype=jnp.bfloat16 recommended for v5e/v6e/v7x production shapes
    # (bf16 operands, f32 accumulation); the demo keeps f32 so the check vs
    # the f32 reference stays tight at 1e-4.
    model = LoraModelJax(k_model, in_features, out_features, config,
                         compute_dtype=None)
    x = jax.random.normal(k_x, (batch, seq, in_features), jnp.float32)

    out = jax.block_until_ready(model(x))

    ref = model.reference(x)
    assert out.shape == (batch, seq, out_features)
    assert jnp.allclose(out, ref, atol=1e-4, rtol=1e-4), "mismatch vs reference"

    print("KERNEL_OK")
</pallas_src>

<mosaic_0001>
module attributes {stable_mosaic.version = 11 : i64} {
  func.func @_lora_kernel_f32(%arg0: i32, %arg1: i32, %arg2: i32, %arg3: memref<16x128xf32, #tpu.memory_space<vmem>>, %arg4: memref<128x128xf32, #tpu.memory_space<vmem>>, %arg5: memref<1x128xf32, #tpu.memory_space<vmem>>, %arg6: memref<16x8xf32, #tpu.memory_space<vmem>>, %arg7: memref<8x128xf32, #tpu.memory_space<vmem>>, %arg8: memref<16x128xf32, #tpu.memory_space<vmem>>) attributes {dimension_semantics = [#tpu.dimension_semantics<parallel>, #tpu.dimension_semantics<parallel>, #tpu.dimension_semantics<arbitrary>], iteration_bounds = array<i64: 1, 1, 1>, scalar_prefetch = 0 : i64, scratch_operands = 0 : i64, tpu.core_type = #tpu.core_type<tc>, window_params = [{transform_indices = @transform_0, window_bounds = array<i64: 16, 128>}, {transform_indices = @transform_1, window_bounds = array<i64: 128, 128>}, {transform_indices = @transform_2, window_bounds = array<i64: 1, 128>}, {transform_indices = @transform_3, window_bounds = array<i64: 16, 8>}, {transform_indices = @transform_4, window_bounds = array<i64: 8, 128>}, {transform_indices = @transform_5, window_bounds = array<i64: 16, 128>}]} {
    %c0_i32 = arith.constant 0 : i32
    %0 = arith.cmpi eq, %arg2, %c0_i32 : i32
    %1 = arith.extui %0 : i1 to i32
    %c0_i32_0 = arith.constant 0 : i32
    %2 = arith.cmpi ne, %1, %c0_i32_0 : i32
    scf.if %2 {
      %c0_8 = arith.constant 0 : index
      %c0_9 = arith.constant 0 : index
      %9 = vector.load %arg5[%c0_8, %c0_9] : memref<1x128xf32, #tpu.memory_space<vmem>>, vector<1x128xf32>
      %c0_10 = arith.constant 0 : index
      %c0_11 = arith.constant 0 : index
      %10 = vector.load %arg6[%c0_10, %c0_11] : memref<16x8xf32, #tpu.memory_space<vmem>>, vector<16x8xf32>
      %c0_12 = arith.constant 0 : index
      %c0_13 = arith.constant 0 : index
      %11 = vector.load %arg7[%c0_12, %c0_13] : memref<8x128xf32, #tpu.memory_space<vmem>>, vector<8x128xf32>
      %cst_14 = arith.constant dense<0.000000e+00> : vector<16x128xf32>
      %12 = tpu.matmul %10, %11, %cst_14 {dimension_numbers = #tpu.dot_dimension_numbers<[1], [0], [0], [1], [0, 0, 1, 1], [], []>} : vector<16x8xf32>, vector<8x128xf32>, vector<16x128xf32> -> vector<16x128xf32>
      %13 = vector.broadcast %9 : vector<1x128xf32> to vector<16x128xf32>
      %14 = arith.addf %13, %12 : vector<16x128xf32>
      %c0_15 = arith.constant 0 : index
      %c0_16 = arith.constant 0 : index
      %15 = vector.load %arg8[%c0_15, %c0_16] : memref<16x128xf32, #tpu.memory_space<vmem>>, vector<16x128xf32>
      tpu.vector_store %arg8[%c0_15, %c0_16], %14 {strides = array<i32>} : memref<16x128xf32, #tpu.memory_space<vmem>>, vector<16x128xf32>,
    } else {
    }
    %c0 = arith.constant 0 : index
    %c0_1 = arith.constant 0 : index
    %3 = vector.load %arg8[%c0, %c0_1] : memref<16x128xf32, #tpu.memory_space<vmem>>, vector<16x128xf32>
    %c0_2 = arith.constant 0 : index
    %c0_3 = arith.constant 0 : index
    %4 = vector.load %arg3[%c0_2, %c0_3] : memref<16x128xf32, #tpu.memory_space<vmem>>, vector<16x128xf32>
    %c0_4 = arith.constant 0 : index
    %c0_5 = arith.constant 0 : index
    %5 = vector.load %arg4[%c0_4, %c0_5] : memref<128x128xf32, #tpu.memory_space<vmem>>, vector<128x128xf32>
    %cst = arith.constant dense<0.000000e+00> : vector<16x128xf32>
    %6 = tpu.matmul %4, %5, %cst {dimension_numbers = #tpu.dot_dimension_numbers<[1], [0], [0], [1], [0, 0, 1, 1], [], []>} : vector<16x128xf32>, vector<128x128xf32>, vector<16x128xf32> -> vector<16x128xf32>
    %7 = arith.addf %3, %6 : vector<16x128xf32>
    %c0_6 = arith.constant 0 : index
    %c0_7 = arith.constant 0 : index
    %8 = vector.load %arg8[%c0_6, %c0_7] : memref<16x128xf32, #tpu.memory_space<vmem>>, vector<16x128xf32>
    tpu.vector_store %arg8[%c0_6, %c0_7], %7 {strides = array<i32>} : memref<16x128xf32, #tpu.memory_space<vmem>>, vector<16x128xf32>,
    return
  }
  func.func @transform_0(%arg0: i32, %arg1: i32, %arg2: i32) -> (i32, i32) {
    %c0_i32 = arith.constant 0 : i32
    return %arg0, %arg2 : i32, i32
  }
  func.func @transform_1(%arg0: i32, %arg1: i32, %arg2: i32) -> (i32, i32) {
    %c0_i32 = arith.constant 0 : i32
    return %arg2, %arg1 : i32, i32
  }
  func.func @transform_2(%arg0: i32, %arg1: i32, %arg2: i32) -> (i32, i32) {
    %c0_i32 = arith.constant 0 : i32
    %c0_i32_0 = arith.constant 0 : i32
    return %c0_i32, %arg1 : i32, i32
  }
  func.func @transform_3(%arg0: i32, %arg1: i32, %arg2: i32) -> (i32, i32) {
    %c0_i32 = arith.constant 0 : i32
    %c0_i32_0 = arith.constant 0 : i32
    return %arg0, %c0_i32 : i32, i32
  }
  func.func @transform_4(%arg0: i32, %arg1: i32, %arg2: i32) -> (i32, i32) {
    %c0_i32 = arith.constant 0 : i32
    %c0_i32_0 = arith.constant 0 : i32
    return %c0_i32, %arg1 : i32, i32
  }
  func.func @transform_5(%arg0: i32, %arg1: i32, %arg2: i32) -> (i32, i32) {
    %c0_i32 = arith.constant 0 : i32
    return %arg0, %arg1 : i32, i32
  }
}

</mosaic_0001>

<llo_original>
// kernel: tpu_custom_call.1
$region0: #{tpu_custom_call.1}
  #allocation0 [shape = 'u32[]', space=smem, size = 0x4, offset = 0x4, fixed_abs, tag = 'smem constant byte address 0x4 - core index']
  #allocation1 [shape = 'u32[144,128]{1,0:T(1,128)}', space=vmem, size = 0x12000, scoped, tag = 'internal scratch']
  %s0 = inlined_call_operand.vmem [shape: f32[16,128], index: 0, kind: input, shape index: {}]
  %s1 = inlined_call_operand.hbm [shape: f32[128,128], index: 1, kind: input, shape index: {}]
  %s2 = inlined_call_operand.vmem [shape: f32[1,128], index: 2, kind: input, shape index: {}]
  %s3 = inlined_call_operand.vmem [shape: f32[16,8], index: 3, kind: input, shape index: {}]
  %s4 = inlined_call_operand.vmem [shape: f32[8,128], index: 4, kind: input, shape index: {}]
  %s5 = inlined_call_operand.hbm [shape: f32[16,128], index: 5, kind: output, shape index: {}]
  %s6 = sld [smem:[#allocation0]]
  $region38: #{tpu_custom_call.1} parent=0
    _
  %s8 = ssub.s32 1, %s6
  %s9 = scalar_select 0, %s8, %s6
  $region1: #{tpu_custom_call.1} parent=0
    #allocation2 [shape = 'u8[65536]{0}', space=vmem, size = 0x10000, scoped, tag = 'input window, operand 1, single buffered']
    #allocation3 [shape = 's32[1]{0}', space=sflag, size = 0x4, scoped, tag = 'scoped memory for tpu_custom_call.1']
    #allocation4 [shape = 's32[1]{0}', space=sflag, size = 0x4, scoped, tag = 'scoped memory for tpu_custom_call.1']
    #allocation5 [shape = 'u8[8192]{0}', space=vmem, size = 0x2000, scoped, tag = 'output window, operand 0, single buffered']
    %10 = vsyncpa [#allocation3], 0
    %11 = vsyncpa [#allocation4], 0
    // Predicated region
    $region2: #{tpu_custom_call.1} parent=1 // pred_check
      _
    $region3: #{tpu_custom_call.1} parent=1 // pred_check_branch
      %13 = sbr.rel (0) target = $region5
    $region4: #{tpu_custom_call.1} parent=1 // pred_region
      _
    $region5: #{tpu_custom_call.1} parent=1 // pred_fallthru
      _
    // Predicated region
    $region6: #{tpu_custom_call.1} parent=1 // pred_check
      _
    $region7: #{tpu_custom_call.1} parent=1 // pred_check_branch
      %15 = sbr.rel (0) target = $region9
    $region8: #{tpu_custom_call.1} parent=1 // pred_region
      %s17 = ssub.s32 2048, 2048
      %18 = vsyncadd [#allocation3], %s17
      %s19 = sshll.u32 [#allocation2], 4
      %s20 = int_to_ptr.vmem [resolvable:$true] %s19
      %25 = dma.hbm_to_vmem [thread:$0]  %s1, 2048, %s20, [#allocation3], 128, 128, 8
    $region9: #{tpu_custom_call.1} parent=1 // pred_fallthru
      _
    // Predicated region
    $region10: #{tpu_custom_call.1} parent=1 // pred_check
      _
    $region11: #{tpu_custom_call.1} parent=1 // pred_check_branch
      %27 = sbr.rel (0) target = $region13
    $region12: #{tpu_custom_call.1} parent=1 // pred_region
      _
    $region13: #{tpu_custom_call.1} parent=1 // pred_fallthru
      _
    // Predicated region
    $region14: #{tpu_custom_call.1} parent=1 // pred_check
      _
    $region15: #{tpu_custom_call.1} parent=1 // pred_check_branch
      %29 = sbr.rel (0) target = $region17
    $region16: #{tpu_custom_call.1} parent=1 // pred_region
      _
    $region17: #{tpu_custom_call.1} parent=1 // pred_fallthru
      _
    // Predicated region
    $region18: #{tpu_custom_call.1} parent=1 // pred_check
      _
    $region19: #{tpu_custom_call.1} parent=1 // pred_check_branch
      %31 = sbr.rel (0) target = $region21
    $region20: #{tpu_custom_call.1} parent=1 // pred_region
      _
    $region21: #{tpu_custom_call.1} parent=1 // pred_fallthru
      _
    // Predicated region
    $region22: #{tpu_custom_call.1} parent=1 // pred_check
      _
    $region23: #{tpu_custom_call.1} parent=1 // pred_check_branch
      %33 = sbr.rel (0) target = $region25
    $region24: #{tpu_custom_call.1} parent=1 // pred_region
      %34 = dma.done [#allocation3], 2048
    $region25: #{tpu_custom_call.1} parent=1 // pred_fallthru
      _
    %p35 = scmp.eq.s32.totalorder 0, 0
    // Predicated region
    $region26: #{tpu_custom_call.1} parent=1 // pred_check
      %p36 = pneg %p35
    $region27: #{tpu_custom_call.1} parent=1 // pred_check_branch
      %38 = sbr.rel (%p36) target = $region29
    $region28: #{tpu_custom_call.1} parent=1 // pred_region
      %v39 = vld [vmem:[%s2] sm:$0x1]
      %v40 = vld [vmem:[%s3] sm:$0xff]
      %v41 = vld [vmem:[%s3 + $0x8] sm:$0xff]
      %v42 = vld [vmem:[%s4] sm:$0xff]
      %vm43 = vcmask 64512
      %v45 = vsel %vm43, %v40, 0
      %v48 = vsel %vm43, %v41, 0
      %50 = vmatprep.subr.mxu0 0.0
      %51 = vmatpush1.msra.mxu0 %v42
      %52 = vmatprep.subr.mxu0 0.0
      %53 = vmatpush1.msra.mxu0 0.0
      %54 = vmatprep.subr.mxu0 0.0
      %55 = vmatpush1.msra.mxu0 0.0
      %56 = vmatprep.subr.mxu0 0.0
      %57 = vmatpush1.msra.mxu0 0.0
      %58 = vmatprep.subr.mxu0 0.0
      %59 = vmatpush1.msra.mxu0 0.0
      %60 = vmatprep.subr.mxu0 0.0
      %61 = vmatpush1.msra.mxu0 0.0
      %62 = vmatprep.subr.mxu0 0.0
      %63 = vmatpush1.msra.mxu0 0.0
      %64 = vmatprep.subr.mxu0 0.0
      %65 = vmatpush1.msra.mxu0 0.0
      %66 = vmatprep.subr.mxu0 0.0
      %67 = vmatpush1.msra.mxu0 0.0
      %68 = vmatprep.subr.mxu0 0.0
      %69 = vmatpush1.msra.mxu0 0.0
      %70 = vmatprep.subr.mxu0 0.0
      %71 = vmatpush1.msra.mxu0 0.0
      %72 = vmatprep.subr.mxu0 0.0
      %73 = vmatpush1.msra.mxu0 0.0
      %74 = vmatprep.subr.mxu0 0.0
      %75 = vmatpush1.msra.mxu0 0.0
      %76 = vmatprep.subr.mxu0 0.0
      %77 = vmatpush1.msra.mxu0 0.0
      %78 = vmatprep.subr.mxu0 0.0
      %79 = vmatpush1.msra.mxu0 0.0
      %80 = vmatprep.subr.mxu0 0.0
      %81 = vmatpush1.msra.mxu0 0.0
      %82 = vmatprep.subr.mxu0 0.0
      %83 = vmatpush1.msra.mxu0 0.0
      %84 = vmatprep.subr.mxu0 0.0
      %85 = vmatpush1.msra.mxu0 0.0
      %86 = vmatprep.subr.mxu0 0.0
      %87 = vmatpush1.msra.mxu0 0.0
      %88 = vmatprep.subr.mxu0 0.0
      %89 = vmatpush1.msra.mxu0 0.0
      %90 = vmatprep.subr.mxu0 0.0
      %91 = vmatpush1.msra.mxu0 0.0
      %92 = vmatprep.subr.mxu0 0.0
      %93 = vmatpush1.msra.mxu0 0.0
      %94 = vmatprep.subr.mxu0 0.0
      %95 = vmatpush1.msra.mxu0 0.0
      %96 = vmatprep.subr.mxu0 0.0
      %97 = vmatpush1.msra.mxu0 0.0
      %98 = vmatprep.subr.mxu0 0.0
      %99 = vmatpush1.msra.mxu0 0.0
      %100 = vmatprep.subr.mxu0 0.0
      %101 = vmatpush1.msra.mxu0 0.0
      %102 = vmatprep.subr.mxu0 0.0
      %103 = vmatpush1.msra.mxu0 0.0
      %104 = vmatprep.subr.mxu0 0.0
      %105 = vmatpush1.msra.mxu0 0.0
      %106 = vmatprep.subr.mxu0 0.0
      %107 = vmatpush1.msra.mxu0 0.0
      %108 = vmatprep.subr.mxu0 0.0
      %109 = vmatpush1.msra.mxu0 0.0
      %110 = vmatprep.subr.mxu0 0.0
      %111 = vmatpush1.msra.mxu0 0.0
      %112 = vmatprep.subr.mxu0 0.0
      %113 = vmatpush1.msra.mxu0 0.0
      %114 = vmatprep.mubr.f32.mxu0 0.0
      %115 = vmatmul.mubr.f32.gmra.mrb[0].mxu0 %v45
      %v116 = vpop.f32.mrb[0].mxu0
      %v117 = vadd.f32 0.0, %v116
      %v118 = vpop.f32.mrb[0].mxu0
      %119 = vmatprep.mubr.f32.mxu0 0.0
      %120 = vmatmul.mubr.f32.gmra.mrb[0].mxu0 %v48
      %v121 = vpop.f32.mrb[0].mxu0
      %v122 = vadd.f32 0.0, %v121
      %v123 = vpop.f32.mrb[0].mxu0
      %124 = vdwg.mxu0
      %v126 = vlaneseq
      %v127 = vshrl.u32 %v126, 7
      %v128 = vsub.s32 0, %v127
      %v129 = vrot.slane %v39, %v128
      %v131 = vadd.f32 %v129, %v117
      %v132 = vadd.f32 %v129, %v122
      %133 = vst [vmem:[#allocation5] sm:$0xff] %v131
      %134 = vst [vmem:[#allocation5 + $0x8] sm:$0xff] %v132
    $region29: #{tpu_custom_call.1} parent=1 // pred_fallthru
      _
    %v135 = vld [vmem:[#allocation5] sm:$0xff]
    %v136 = vld [vmem:[#allocation5 + $0x8] sm:$0xff]
    %v137 = vld [vmem:[%s0] sm:$0xff]
    %v138 = vld [vmem:[%s0 + $0x8] sm:$0xff]
    %v139 = vld [vmem:[#allocation2] sm:$0xff]
    %v140 = vld [vmem:[#allocation2 + $0x8] sm:$0xff]
    %v141 = vld [vmem:[#allocation2 + $0x10] sm:$0xff]
    %v142 = vld [vmem:[#allocation2 + $0x18] sm:$0xff]
    %v143 = vld [vmem:[#allocation2 + $0x20] sm:$0xff]
    %v144 = vld [vmem:[#allocation2 + $0x28] sm:$0xff]
    %v145 = vld [vmem:[#allocation2 + $0x30] sm:$0xff]
    %v146 = vld [vmem:[#allocation2 + $0x38] sm:$0xff]
    %v147 = vld [vmem:[#allocation2 + $0x40] sm:$0xff]
    %v148 = vld [vmem:[#allocation2 + $0x48] sm:$0xff]
    %v149 = vld [vmem:[#allocation2 + $0x50] sm:$0xff]
    %v150 = vld [vmem:[#allocation2 + $0x58] sm:$0xff]
    %v151 = vld [vmem:[#allocation2 + $0x60] sm:$0xff]
    %v152 = vld [vmem:[#allocation2 + $0x68] sm:$0xff]
    %v153 = vld [vmem:[#allocation2 + $0x70] sm:$0xff]
    %v154 = vld [vmem:[#allocation2 + $0x78] sm:$0xff]
    %155 = vmatprep.subr.mxu0 0.0
    %156 = vmatpush1.msra.mxu0 %v139
    %157 = vmatprep.subr.mxu0 0.0
    %158 = vmatpush1.msra.mxu0 %v140
    %159 = vmatprep.subr.mxu0 0.0
    %160 = vmatpush1.msra.mxu0 %v141
    %161 = vmatprep.subr.mxu0 0.0
    %162 = vmatpush1.msra.mxu0 %v142
    %163 = vmatprep.subr.mxu0 0.0
    %164 = vmatpush1.msra.mxu0 %v143
    %165 = vmatprep.subr.mxu0 0.0
    %166 = vmatpush1.msra.mxu0 %v144
    %167 = vmatprep.subr.mxu0 0.0
    %168 = vmatpush1.msra.mxu0 %v145
    %169 = vmatprep.subr.mxu0 0.0
    %170 = vmatpush1.msra.mxu0 %v146
    %171 = vmatprep.subr.mxu0 0.0
    %172 = vmatpush1.msra.mxu0 %v147
    %173 = vmatprep.subr.mxu0 0.0
    %174 = vmatpush1.msra.mxu0 %v148
    %175 = vmatprep.subr.mxu0 0.0
    %176 = vmatpush1.msra.mxu0 %v149
    %177 = vmatprep.subr.mxu0 0.0
    %178 = vmatpush1.msra.mxu0 %v150
    %179 = vmatprep.subr.mxu0 0.0
    %180 = vmatpush1.msra.mxu0 %v151
    %181 = vmatprep.subr.mxu0 0.0
    %182 = vmatpush1.msra.mxu0 %v152
    %183 = vmatprep.subr.mxu0 0.0
    %184 = vmatpush1.msra.mxu0 %v153
    %185 = vmatprep.subr.mxu0 0.0
    %186 = vmatpush1.msra.mxu0 %v154
    %187 = vmatprep.subr.mxu0 0.0
    %188 = vmatpush1.msra.mxu0 0.0
    %189 = vmatprep.subr.mxu0 0.0
    %190 = vmatpush1.msra.mxu0 0.0
    %191 = vmatprep.subr.mxu0 0.0
    %192 = vmatpush1.msra.mxu0 0.0
    %193 = vmatprep.subr.mxu0 0.0
    %194 = vmatpush1.msra.mxu0 0.0
    %195 = vmatprep.subr.mxu0 0.0
    %196 = vmatpush1.msra.mxu0 0.0
    %197 = vmatprep.subr.mxu0 0.0
    %198 = vmatpush1.msra.mxu0 0.0
    %199 = vmatprep.subr.mxu0 0.0
    %200 = vmatpush1.msra.mxu0 0.0
    %201 = vmatprep.subr.mxu0 0.0
    %202 = vmatpush1.msra.mxu0 0.0
    %203 = vmatprep.subr.mxu0 0.0
    %204 = vmatpush1.msra.mxu0 0.0
    %205 = vmatprep.subr.mxu0 0.0
    %206 = vmatpush1.msra.mxu0 0.0
    %207 = vmatprep.subr.mxu0 0.0
    %208 = vmatpush1.msra.mxu0 0.0
    %209 = vmatprep.subr.mxu0 0.0
    %210 = vmatpush1.msra.mxu0 0.0
    %211 = vmatprep.subr.mxu0 0.0
    %212 = vmatpush1.msra.mxu0 0.0
    %213 = vmatprep.subr.mxu0 0.0
    %214 = vmatpush1.msra.mxu0 0.0
    %215 = vmatprep.subr.mxu0 0.0
    %216 = vmatpush1.msra.mxu0 0.0
    %217 = vmatprep.subr.mxu0 0.0
    %218 = vmatpush1.msra.mxu0 0.0
    %219 = vmatprep.mubr.f32.mxu0 0.0
    %220 = vmatmul.mubr.f32.gmra.mrb[0].mxu0 %v137
    %v221 = vpop.f32.mrb[0].mxu0
    %v222 = vadd.f32 0.0, %v221
    %v223 = vpop.f32.mrb[0].mxu0
    %224 = vmatprep.mubr.f32.mxu0 0.0
    %225 = vmatmul.mubr.f32.gmra.mrb[0].mxu0 %v138
    %v226 = vpop.f32.mrb[0].mxu0
    %v227 = vadd.f32 0.0, %v226
    %v228 = vpop.f32.mrb[0].mxu0
    %229 = vdwg.mxu0
    %v230 = vadd.f32 %v135, %v222
    %v231 = vadd.f32 %v136, %v227
    %232 = vst [vmem:[#allocation5] sm:$0xff] %v230
    %233 = vst [vmem:[#allocation5 + $0x8] sm:$0xff] %v231
    // Predicated region
    $region30: #{tpu_custom_call.1} parent=1 // pred_check
      _
    $region31: #{tpu_custom_call.1} parent=1 // pred_check_branch
      %235 = sbr.rel (0) target = $region33
    $region32: #{tpu_custom_call.1} parent=1 // pred_region
      %s237 = ssub.s32 256, 256
      %238 = vsyncadd [#allocation4], %s237
      %s239 = sshll.u32 [#allocation5], 4
      %s240 = int_to_ptr.vmem [resolvable:$true] %s239
      %245 = dma.vmem_to_hbm [thread:$0]  %s240, 256, %s5, [#allocation4], 128, 128, 8
    $region33: #{tpu_custom_call.1} parent=1 // pred_fallthru
      _
    // Predicated region
    $region34: #{tpu_custom_call.1} parent=1 // pred_check
      _
    $region35: #{tpu_custom_call.1} parent=1 // pred_check_branch
      %247 = sbr.rel (0) target = $region37
    $region36: #{tpu_custom_call.1} parent=1 // pred_region
      %248 = dma.done [#allocation4], 256
    $region37: #{tpu_custom_call.1} parent=1 // pred_fallthru
      _
    %249 = vsyncpa [#allocation3], 1
    %250 = vsyncpa [#allocation4], 1

</llo_original>
